<compile_context>
chip_gen: v6e
topology: v6e:2x2x1
jax: 0.10.0
libtpu: 0.0.40
codegen_flags: <defaults>
</compile_context>

<pallas_src>
import jax
import jax.numpy as jnp
from jax.experimental import pallas as pl
from jax.experimental.pallas import tpu as pltpu


def _hebbian_kernel(scale_ref, x_ref, xt_ref, w_ref, hidden_ref, w_new_ref):
    """Per-H-tile kernel: matmul + tanh + outer-product update + clamp (all f32)."""
    x = x_ref[...]                                  # (B, I)   resident across tiles
    w = w_ref[...]                                  # (I, tile)

    # hidden = tanh(x @ W) -- MXU matmul with f32 accumulation, EUP tanh.
    hidden = jnp.tanh(jnp.dot(x, w, preferred_element_type=jnp.float32))
    hidden_ref[...] = hidden

    # Fold the scalar into the small (B, tile) operand, not the (I, tile) result.
    scale = scale_ref[0, 0]
    scaled_hidden = hidden * scale

    # delta_w = x^T @ (scale * hidden); x^T is pre-transposed once in the wrapper.
    delta_w = jnp.dot(xt_ref[...], scaled_hidden, preferred_element_type=jnp.float32)

    # W_new = clamp(W + delta_w, -1, 1) written straight back into the aliased W buffer.
    w_new_ref[...] = jnp.clip(w + delta_w, -1.0, 1.0)


def _round_up(x, m):
    return ((x + m - 1) // m) * m


def _default_vmem_budget():
    """Generation-aware (limit, headroom) in bytes."""
    try:
        info = pltpu.get_tpu_info()
        cap = getattr(info, "vmem_capacity_bytes", None)
    except Exception:  # pragma: no cover - info query unavailable
        cap = None
    if cap is None:
        return 40 << 20, 6 << 20          # conservative: safe on v7x's 64 MiB
    if cap <= (64 << 20):                 # v7x: 64 MiB per TensorCore
        return 44 << 20, 6 << 20
    return 100 << 20, 4 << 20             # v5e / v6e: 128 MiB physical


def hebbian_forward(
    x,
    weights,
    *,
    learning_rate=0.01,
    temporal_weight=1.0,
    tile_h=1024,
    vmem_limit_bytes=None,
):
    """Runs HebbianLearner.forward; returns (hidden, updated_weights).

    The weights input is aliased to the W_new output inside the pallas_call; when called
    under jit with donated weights, the update is fully in place (no padded copies).
    """
    batch, input_size = x.shape
    input_size_w, hidden_size = weights.shape
    assert input_size == input_size_w

    if vmem_limit_bytes is None:
        vmem_limit_bytes, headroom = _default_vmem_budget()
    else:
        headroom = 4 << 20

    # ---- pick a lane-dense H tile (multiple of 128), no padding of W needed ----
    if hidden_size < 128:
        tile = hidden_size                              # full last dim: single block
    else:
        tile = max(128, min(_round_up(tile_h, 128), (hidden_size // 128) * 128))
        # Guarantee >= 2 H tiles when H >= 256 so the 'parallel' axis spans both v7x TCs.
        if hidden_size >= 256:
            tile = min(tile, max(128, _round_up(pl.cdiv(hidden_size, 2), 128)))

    # Double-buffered W-in + W-out + hidden tiles, plus resident x and x^T.
    def _vmem_need(t):
        return 4 * (2 * (2 * input_size * t + batch * t) + 2 * 2 * batch * input_size)

    while tile > 128 and _vmem_need(tile) > vmem_limit_bytes - headroom:
        tile -= 128

    if _vmem_need(tile) > vmem_limit_bytes - headroom:
        raise ValueError(
            f"hebbian_forward: one ({input_size}, {tile}) weight tile plus the resident "
            f"({batch}, {input_size}) input does not fit in the VMEM budget "
            f"({vmem_limit_bytes} B); input_size tiling is required for this problem size."
        )

    num_tiles = pl.cdiv(hidden_size, tile)

    # Tiny precomputes (done once by XLA outside the kernel).
    x_t = jnp.transpose(x)                                            # (I, B)
    scale = (
        jnp.asarray(learning_rate, jnp.float32)
        * jnp.asarray(temporal_weight, jnp.float32)
        / jnp.float32(batch)
    ).reshape(1, 1)

    cost = pl.CostEstimate(
        flops=4 * batch * input_size * hidden_size,        # two (B,I)x(I,H)-sized matmuls
        transcendentals=batch * hidden_size,               # tanh
        bytes_accessed=4 * (2 * batch * input_size
                            + 2 * input_size * hidden_size
                            + batch * hidden_size),
    )

    hidden, w_new = pl.pallas_call(
        _hebbian_kernel,
        out_shape=(
            jax.ShapeDtypeStruct((batch, hidden_size), jnp.float32),
            jax.ShapeDtypeStruct((input_size, hidden_size), jnp.float32),
        ),
        grid=(num_tiles,),
        in_specs=[
            pl.BlockSpec(memory_space=pltpu.MemorySpace.SMEM),           # scale (1,1)
            pl.BlockSpec((batch, input_size), lambda j: (0, 0)),         # x resident
            pl.BlockSpec((input_size, batch), lambda j: (0, 0)),         # x^T resident
            pl.BlockSpec((input_size, tile), lambda j: (0, j)),          # W tile
        ],
        out_specs=(
            pl.BlockSpec((batch, tile), lambda j: (0, j)),               # hidden tile
            pl.BlockSpec((input_size, tile), lambda j: (0, j)),          # W_new tile
        ),
        input_output_aliases={3: 1},   # W buffer reused for W_new (in-place RMW)
        compiler_params=pltpu.CompilerParams(
            dimension_semantics=("parallel",),
            vmem_limit_bytes=vmem_limit_bytes,
        ),
        cost_estimate=cost,
    )(scale, x, x_t, weights)

    return hidden, w_new


def hebbian_forward_ref(x, weights, *, learning_rate=0.01, temporal_weight=1.0):
    """Pure-JAX reference mirroring the PyTorch code."""
    hidden = jnp.tanh(x @ weights)
    batch = x.shape[0]
    delta_w = (learning_rate * temporal_weight / batch) * (x.T @ hidden)
    w_new = jnp.clip(weights + delta_w, -1.0, 1.0)
    return hidden, w_new


if __name__ == "__main__":
    key = jax.random.PRNGKey(0)
    k1, k2, k3, k4, k5, k6 = jax.random.split(key, 6)

    # Case 1: toy size from the module (H=64 < 128 -> single full-width block, grid=1).
    i1, h1, b1 = 32, 64, 8
    w1 = jax.random.normal(k1, (i1, h1), jnp.float32) * 0.1
    x1 = jax.random.normal(k2, (b1, i1), jnp.float32)
    hid1_ref, w1_ref = hebbian_forward_ref(x1, w1)
    hid1, w1_new = hebbian_forward(x1, w1)
    jax.block_until_ready((hid1, w1_new))
    assert hid1.shape == (b1, h1) and w1_new.shape == (i1, h1)
    assert jnp.allclose(hid1, hid1_ref, atol=1e-5, rtol=1e-5)
    assert jnp.allclose(w1_new, w1_ref, atol=1e-5, rtol=1e-5)

    # Case 2: multi-tile grid over H (>= 2 lane-dense 128-wide tiles), aliased W update.
    i2, h2, b2 = 256, 256, 8
    w2 = jax.random.normal(k3, (i2, h2), jnp.float32) * 0.1
    x2 = jax.random.normal(k4, (b2, i2), jnp.float32)
    hid2_ref, w2_ref = hebbian_forward_ref(x2, w2)
    hid2, w2_new = hebbian_forward(x2, w2)
    jax.block_until_ready((hid2, w2_new))
    assert hid2.shape == (b2, h2) and w2_new.shape == (i2, h2)
    assert jnp.allclose(hid2, hid2_ref, atol=1e-5, rtol=1e-5)
    assert jnp.allclose(w2_new, w2_ref, atol=1e-5, rtol=1e-5)

    # Case 3: ragged H (200 % 128 != 0): masked edge block, no padded W copy / slice.
    i3, h3, b3 = 128, 200, 8
    w3 = jax.random.normal(k5, (i3, h3), jnp.float32) * 0.1
    x3 = jax.random.normal(k6, (b3, i3), jnp.float32)
    hid3_ref, w3_ref = hebbian_forward_ref(x3, w3)
    hid3, w3_new = hebbian_forward(x3, w3)
    jax.block_until_ready((hid3, w3_new))
    assert hid3.shape == (b3, h3) and w3_new.shape == (i3, h3)
    assert jnp.allclose(hid3, hid3_ref, atol=1e-5, rtol=1e-5)
    assert jnp.allclose(w3_new, w3_ref, atol=1e-5, rtol=1e-5)

    print("KERNEL_OK")
</pallas_src>

<mosaic_0001>
module attributes {stable_mosaic.version = 11 : i64} {
  func.func @_hebbian_kernel(%arg0: i32, %arg1: memref<1x1xf32, #tpu.memory_space<smem>>, %arg2: memref<8x32xf32, #tpu.memory_space<vmem>>, %arg3: memref<32x8xf32, #tpu.memory_space<vmem>>, %arg4: memref<32x64xf32, #tpu.memory_space<vmem>>, %arg5: memref<8x64xf32, #tpu.memory_space<vmem>>, %arg6: memref<32x64xf32, #tpu.memory_space<vmem>>) attributes {dimension_semantics = [#tpu.dimension_semantics<parallel>], iteration_bounds = array<i64: 1>, scalar_prefetch = 0 : i64, scratch_operands = 0 : i64, tpu.core_type = #tpu.core_type<tc>, window_params = [{transform_indices = @transform_0, window_bounds = array<i64: 1, 1>}, {pipeline_mode = #tpu.pipeline_mode<synchronous>, transform_indices = @transform_1, window_bounds = array<i64: 8, 32>}, {pipeline_mode = #tpu.pipeline_mode<synchronous>, transform_indices = @transform_2, window_bounds = array<i64: 32, 8>}, {transform_indices = @transform_3, window_bounds = array<i64: 32, 64>}, {transform_indices = @transform_4, window_bounds = array<i64: 8, 64>}, {transform_indices = @transform_5, window_bounds = array<i64: 32, 64>}]} {
    %c0 = arith.constant 0 : index
    %c0_0 = arith.constant 0 : index
    %0 = vector.load %arg2[%c0, %c0_0] : memref<8x32xf32, #tpu.memory_space<vmem>>, vector<8x32xf32>
    %c0_1 = arith.constant 0 : index
    %c0_2 = arith.constant 0 : index
    %1 = vector.load %arg4[%c0_1, %c0_2] : memref<32x64xf32, #tpu.memory_space<vmem>>, vector<32x64xf32>
    %cst = arith.constant dense<0.000000e+00> : vector<8x64xf32>
    %2 = tpu.matmul %0, %1, %cst {dimension_numbers = #tpu.dot_dimension_numbers<[1], [0], [0], [1], [0, 0, 1, 1], [], []>} : vector<8x32xf32>, vector<32x64xf32>, vector<8x64xf32> -> vector<8x64xf32>
    %3 = math.tanh %2 : vector<8x64xf32>
    %c0_3 = arith.constant 0 : index
    %c0_4 = arith.constant 0 : index
    %4 = vector.load %arg5[%c0_3, %c0_4] : memref<8x64xf32, #tpu.memory_space<vmem>>, vector<8x64xf32>
    tpu.vector_store %arg5[%c0_3, %c0_4], %3 {strides = array<i32>} : memref<8x64xf32, #tpu.memory_space<vmem>>, vector<8x64xf32>,
    %c0_5 = arith.constant 0 : index
    %c0_6 = arith.constant 0 : index
    %5 = memref.load %arg1[%c0_5, %c0_6] : memref<1x1xf32, #tpu.memory_space<smem>>
    %6 = vector.broadcast %5 : f32 to vector<8x64xf32>
    %7 = arith.mulf %3, %6 : vector<8x64xf32>
    %c0_7 = arith.constant 0 : index
    %c0_8 = arith.constant 0 : index
    %8 = vector.load %arg3[%c0_7, %c0_8] : memref<32x8xf32, #tpu.memory_space<vmem>>, vector<32x8xf32>
    %cst_9 = arith.constant dense<0.000000e+00> : vector<32x64xf32>
    %9 = tpu.matmul %8, %7, %cst_9 {dimension_numbers = #tpu.dot_dimension_numbers<[1], [0], [0], [1], [0, 0, 1, 1], [], []>} : vector<32x8xf32>, vector<8x64xf32>, vector<32x64xf32> -> vector<32x64xf32>
    %10 = arith.addf %1, %9 : vector<32x64xf32>
    %cst_10 = arith.constant -1.000000e+00 : f32
    %cst_11 = arith.constant 1.000000e+00 : f32
    %11 = vector.broadcast %cst_10 : f32 to vector<32x64xf32>
    %12 = arith.maximumf %11, %10 : vector<32x64xf32>
    %13 = vector.broadcast %cst_11 : f32 to vector<32x64xf32>
    %14 = arith.minimumf %13, %12 : vector<32x64xf32>
    %c0_12 = arith.constant 0 : index
    %c0_13 = arith.constant 0 : index
    %15 = vector.load %arg6[%c0_12, %c0_13] : memref<32x64xf32, #tpu.memory_space<vmem>>, vector<32x64xf32>
    tpu.vector_store %arg6[%c0_12, %c0_13], %14 {strides = array<i32>} : memref<32x64xf32, #tpu.memory_space<vmem>>, vector<32x64xf32>,
    return
  }
  func.func @transform_0(%arg0: i32) -> (i32, i32) {
    %c0_i32 = arith.constant 0 : i32
    %c0_i32_0 = arith.constant 0 : i32
    %c0_i32_1 = arith.constant 0 : i32
    return %c0_i32, %c0_i32_0 : i32, i32
  }
  func.func @transform_1(%arg0: i32) -> (i32, i32) {
    %c0_i32 = arith.constant 0 : i32
    %c0_i32_0 = arith.constant 0 : i32
    %c0_i32_1 = arith.constant 0 : i32
    return %c0_i32, %c0_i32_0 : i32, i32
  }
  func.func @transform_2(%arg0: i32) -> (i32, i32) {
    %c0_i32 = arith.constant 0 : i32
    %c0_i32_0 = arith.constant 0 : i32
    %c0_i32_1 = arith.constant 0 : i32
    return %c0_i32, %c0_i32_0 : i32, i32
  }
  func.func @transform_3(%arg0: i32) -> (i32, i32) {
    %c0_i32 = arith.constant 0 : i32
    %c0_i32_0 = arith.constant 0 : i32
    return %c0_i32, %arg0 : i32, i32
  }
  func.func @transform_4(%arg0: i32) -> (i32, i32) {
    %c0_i32 = arith.constant 0 : i32
    %c0_i32_0 = arith.constant 0 : i32
    return %c0_i32, %arg0 : i32, i32
  }
  func.func @transform_5(%arg0: i32) -> (i32, i32) {
    %c0_i32 = arith.constant 0 : i32
    %c0_i32_0 = arith.constant 0 : i32
    return %c0_i32, %arg0 : i32, i32
  }
}

</mosaic_0001>

<llo_original>
// kernel: tpu_custom_call.1
$region0: #{tpu_custom_call.1}
  #allocation0 [shape = 'u32[]', space=smem, size = 0x4, offset = 0x4, fixed_abs, tag = 'smem constant byte address 0x4 - core index']
  #allocation1 [shape = 'u32[144,128]{1,0:T(1,128)}', space=vmem, size = 0x12000, scoped, tag = 'internal scratch']
  #allocation2 [shape = 'f32[1,1]{1,0:T(1,128)S(6)}', space=smem, size = 0x200, scoped, tag = 'scoped memory for tpu_custom_call.1']
  %s0 = inlined_call_operand.<no memory space> [shape: f32[1,1], index: 0, kind: input, shape index: {}]
  %s1 = inlined_call_operand.vmem [shape: f32[8,32], index: 1, kind: input, shape index: {}]
  %s2 = inlined_call_operand.vmem [shape: f32[32,8], index: 2, kind: input, shape index: {}]
  %s3 = inlined_call_operand.hbm [shape: f32[32,64], index: 3, kind: input, shape index: {}, may-alias: {3,5}]
  %s4 = inlined_call_operand.hbm [shape: f32[8,64], index: 4, kind: output, shape index: {0}]
  %s5 = inlined_call_operand.hbm [shape: f32[32,64], index: 5, kind: output, shape index: {1}, may-alias: {3,5}]
  %6 = xla_tuple %s4, %s5
  %s7 = sld [smem:[#allocation0]]
  $region38: #{tpu_custom_call.1} parent=0
    _
  %s9 = ssub.s32 1, %s7
  %s10 = scalar_select 0, %s9, %s7
  %11 = sst [smem:[#allocation2]] %s0
  $region1: #{tpu_custom_call.1} parent=0
    #allocation3 [shape = 'u8[16384]{0}', space=vmem, size = 0x4000, scoped, tag = 'input window, operand 3, single buffered']
    #allocation4 [shape = 's32[1]{0}', space=sflag, size = 0x4, scoped, tag = 'scoped memory for tpu_custom_call.1']
    #allocation5 [shape = 's32[1]{0}', space=sflag, size = 0x4, scoped, tag = 'scoped memory for tpu_custom_call.1']
    #allocation6 [shape = 'u8[4096]{0}', space=vmem, size = 0x1000, scoped, tag = 'output window, operand 0, single buffered']
    #allocation7 [shape = 'u8[16384]{0}', space=vmem, size = 0x4000, scoped, tag = 'output window, operand 1, single buffered']
    #allocation8 [shape = 's32[1]{0}', space=sflag, size = 0x4, scoped, tag = 'scoped memory for tpu_custom_call.1']
    %12 = vsyncpa [#allocation4], 0
    %13 = vsyncpa [#allocation5], 0
    %14 = vsyncpa [#allocation8], 0
    // Predicated region
    $region2: #{tpu_custom_call.1} parent=1 // pred_check
      _
    $region3: #{tpu_custom_call.1} parent=1 // pred_check_branch
      %16 = sbr.rel (0) target = $region5
    $region4: #{tpu_custom_call.1} parent=1 // pred_region
      _
    $region5: #{tpu_custom_call.1} parent=1 // pred_fallthru
      _
    // Predicated region
    $region6: #{tpu_custom_call.1} parent=1 // pred_check
      _
    $region7: #{tpu_custom_call.1} parent=1 // pred_check_branch
      %18 = sbr.rel (0) target = $region9
    $region8: #{tpu_custom_call.1} parent=1 // pred_region
      _
    $region9: #{tpu_custom_call.1} parent=1 // pred_fallthru
      _
    // Predicated region
    $region10: #{tpu_custom_call.1} parent=1 // pred_check
      _
    $region11: #{tpu_custom_call.1} parent=1 // pred_check_branch
      %20 = sbr.rel (0) target = $region13
    $region12: #{tpu_custom_call.1} parent=1 // pred_region
      _
    $region13: #{tpu_custom_call.1} parent=1 // pred_fallthru
      _
    // Predicated region
    $region14: #{tpu_custom_call.1} parent=1 // pred_check
      _
    $region15: #{tpu_custom_call.1} parent=1 // pred_check_branch
      %22 = sbr.rel (0) target = $region17
    $region16: #{tpu_custom_call.1} parent=1 // pred_region
      %s24 = ssub.s32 512, 512
      %25 = vsyncadd [#allocation4], %s24
      %s26 = sshll.u32 [#allocation3], 4
      %s27 = int_to_ptr.vmem [resolvable:$true] %s26
      %32 = dma.hbm_to_vmem [thread:$0]  %s3, 512, %s27, [#allocation4], 128, 128, 8
    $region17: #{tpu_custom_call.1} parent=1 // pred_fallthru
      _
    // Predicated region
    $region18: #{tpu_custom_call.1} parent=1 // pred_check
      _
    $region19: #{tpu_custom_call.1} parent=1 // pred_check_branch
      %34 = sbr.rel (0) target = $region21
    $region20: #{tpu_custom_call.1} parent=1 // pred_region
      %35 = dma.done [#allocation4], 512
    $region21: #{tpu_custom_call.1} parent=1 // pred_fallthru
      _
    %v36 = vld [vmem:[%s1] sm:$0xff]
    %v37 = vld [vmem:[#allocation3] sm:$0xff]
    %v38 = vld [vmem:[#allocation3 + $0x8] sm:$0xff]
    %v39 = vld [vmem:[#allocation3 + $0x10] sm:$0xff]
    %v40 = vld [vmem:[#allocation3 + $0x18] sm:$0xff]
    %vm41 = vcmask 261120
    %v43 = vsel %vm41, %v36, 0
    %45 = vmatprep.subr.mxu0 0.0
    %46 = vmatpush1.msra.mxu0 0.0
    %47 = vmatprep.subr.mxu0 0.0
    %48 = vmatpush1.msra.mxu0 0.0
    %49 = vmatprep.subr.mxu0 0.0
    %50 = vmatpush1.msra.mxu0 0.0
    %51 = vmatprep.subr.mxu0 0.0
    %52 = vmatpush1.msra.mxu0 0.0
    %53 = vmatprep.subr.mxu0 0.0
    %54 = vmatpush1.msra.mxu0 0.0
    %55 = vmatprep.subr.mxu0 0.0
    %56 = vmatpush1.msra.mxu0 0.0
    %57 = vmatprep.subr.mxu0 0.0
    %58 = vmatpush1.msra.mxu0 0.0
    %59 = vmatprep.subr.mxu0 0.0
    %60 = vmatpush1.msra.mxu0 0.0
    %61 = vmatprep.subr.mxu0 0.0
    %62 = vmatpush1.msra.mxu0 0.0
    %63 = vmatprep.subr.mxu0 0.0
    %64 = vmatpush1.msra.mxu0 0.0
    %65 = vmatprep.subr.mxu0 0.0
    %66 = vmatpush1.msra.mxu0 0.0
    %67 = vmatprep.subr.mxu0 0.0
    %68 = vmatpush1.msra.mxu0 0.0
    %69 = vmatprep.subr.mxu0 0.0
    %70 = vmatpush1.msra.mxu0 %v40
    %71 = vmatprep.subr.mxu0 0.0
    %72 = vmatpush1.msra.mxu0 %v39
    %73 = vmatprep.subr.mxu0 0.0
    %74 = vmatpush1.msra.mxu0 %v38
    %75 = vmatprep.subr.mxu0 0.0
    %76 = vmatpush1.msra.mxu0 %v37
    %77 = vmatprep.subr.mxu0 0.0
    %78 = vmatpush2.msra.mxu0 0.0
    %79 = vmatprep.subr.mxu0 0.0
    %80 = vmatpush2.msra.mxu0 0.0
    %81 = vmatprep.subr.mxu0 0.0
    %82 = vmatpush2.msra.mxu0 0.0
    %83 = vmatprep.subr.mxu0 0.0
    %84 = vmatpush2.msra.mxu0 0.0
    %85 = vmatprep.subr.mxu0 0.0
    %86 = vmatpush2.msra.mxu0 0.0
    %87 = vmatprep.subr.mxu0 0.0
    %88 = vmatpush2.msra.mxu0 0.0
    %89 = vmatprep.subr.mxu0 0.0
    %90 = vmatpush2.msra.mxu0 0.0
    %91 = vmatprep.subr.mxu0 0.0
    %92 = vmatpush2.msra.mxu0 0.0
    %93 = vmatprep.subr.mxu0 0.0
    %94 = vmatpush2.msra.mxu0 0.0
    %95 = vmatprep.subr.mxu0 0.0
    %96 = vmatpush2.msra.mxu0 0.0
    %97 = vmatprep.subr.mxu0 0.0
    %98 = vmatpush2.msra.mxu0 0.0
    %99 = vmatprep.subr.mxu0 0.0
    %100 = vmatpush2.msra.mxu0 0.0
    %101 = vmatprep.subr.mxu0 0.0
    %102 = vmatpush2.msra.mxu0 0.0
    %103 = vmatprep.subr.mxu0 0.0
    %104 = vmatpush2.msra.mxu0 0.0
    %105 = vmatprep.subr.mxu0 0.0
    %106 = vmatpush2.msra.mxu0 0.0
    %107 = vmatprep.subr.mxu0 0.0
    %108 = vmatpush2.msra.mxu0 0.0
    %109 = vmatprep.mubr.f32.mxu0 0.0
    %110 = vmatmul.mubr.f32.gmra.mxu0 %v43
    %v111 = vpop.f32.mrf.mxu0
    %v112 = vadd.f32 0.0, %v111
    %v113 = vpop.f32.mrf.mxu0
    %114 = vdwg.mxu0
    %v115 = vtanh.pop %v112
    %vm116 = vcmask 523264
    %117 = vst.msk [vmem:[#allocation6] sm:$0xff] %vm116, %v115
    %s118 = sld [smem:[#allocation2]]
    %v119 = vstv %s118
    %v120 = vmul.f32 %v115, %v119
    %v121 = vld [vmem:[%s2] sm:$0xff]
    %v122 = vld [vmem:[%s2 + $0x8] sm:$0xff]
    %v123 = vld [vmem:[%s2 + $0x10] sm:$0xff]
    %v124 = vld [vmem:[%s2 + $0x18] sm:$0xff]
    %vm125 = vcmask 64512
    %v127 = vsel %vm125, %v121, 0
    %v130 = vsel %vm125, %v122, 0
    %v133 = vsel %vm125, %v123, 0
    %v136 = vsel %vm125, %v124, 0
    %138 = vmatprep.subr.mxu0 0.0
    %139 = vmatpush1.msra.mxu0 0.0
    %140 = vmatprep.subr.mxu0 0.0
    %141 = vmatpush1.msra.mxu0 0.0
    %142 = vmatprep.subr.mxu0 0.0
    %143 = vmatpush1.msra.mxu0 0.0
    %144 = vmatprep.subr.mxu0 0.0
    %145 = vmatpush1.msra.mxu0 0.0
    %146 = vmatprep.subr.mxu0 0.0
    %147 = vmatpush1.msra.mxu0 0.0
    %148 = vmatprep.subr.mxu0 0.0
    %149 = vmatpush1.msra.mxu0 0.0
    %150 = vmatprep.subr.mxu0 0.0
    %151 = vmatpush1.msra.mxu0 0.0
    %152 = vmatprep.subr.mxu0 0.0
    %153 = vmatpush1.msra.mxu0 0.0
    %154 = vmatprep.subr.mxu0 0.0
    %155 = vmatpush1.msra.mxu0 0.0
    %156 = vmatprep.subr.mxu0 0.0
    %157 = vmatpush1.msra.mxu0 0.0
    %158 = vmatprep.subr.mxu0 0.0
    %159 = vmatpush1.msra.mxu0 0.0
    %160 = vmatprep.subr.mxu0 0.0
    %161 = vmatpush1.msra.mxu0 0.0
    %162 = vmatprep.subr.mxu0 0.0
    %163 = vmatpush1.msra.mxu0 0.0
    %164 = vmatprep.subr.mxu0 0.0
    %165 = vmatpush1.msra.mxu0 0.0
    %166 = vmatprep.subr.mxu0 0.0
    %167 = vmatpush1.msra.mxu0 0.0
    %168 = vmatprep.subr.mxu0 0.0
    %169 = vmatpush1.msra.mxu0 %v120
    %170 = vmatprep.subr.mxu0 0.0
    %171 = vmatpush2.msra.mxu0 0.0
    %172 = vmatprep.subr.mxu0 0.0
    %173 = vmatpush2.msra.mxu0 0.0
    %174 = vmatprep.subr.mxu0 0.0
    %175 = vmatpush2.msra.mxu0 0.0
    %176 = vmatprep.subr.mxu0 0.0
    %177 = vmatpush2.msra.mxu0 0.0
    %178 = vmatprep.subr.mxu0 0.0
    %179 = vmatpush2.msra.mxu0 0.0
    %180 = vmatprep.subr.mxu0 0.0
    %181 = vmatpush2.msra.mxu0 0.0
    %182 = vmatprep.subr.mxu0 0.0
    %183 = vmatpush2.msra.mxu0 0.0
    %184 = vmatprep.subr.mxu0 0.0
    %185 = vmatpush2.msra.mxu0 0.0
    %186 = vmatprep.subr.mxu0 0.0
    %187 = vmatpush2.msra.mxu0 0.0
    %188 = vmatprep.subr.mxu0 0.0
    %189 = vmatpush2.msra.mxu0 0.0
    %190 = vmatprep.subr.mxu0 0.0
    %191 = vmatpush2.msra.mxu0 0.0
    %192 = vmatprep.subr.mxu0 0.0
    %193 = vmatpush2.msra.mxu0 0.0
    %194 = vmatprep.subr.mxu0 0.0
    %195 = vmatpush2.msra.mxu0 0.0
    %196 = vmatprep.subr.mxu0 0.0
    %197 = vmatpush2.msra.mxu0 0.0
    %198 = vmatprep.subr.mxu0 0.0
    %199 = vmatpush2.msra.mxu0 0.0
    %200 = vmatprep.subr.mxu0 0.0
    %201 = vmatpush2.msra.mxu0 0.0
    %202 = vmatprep.mubr.f32.mxu0 0.0
    %203 = vmatmul.mubr.f32.gmra.mxu0 %v127
    %v204 = vpop.f32.mrf.mxu0
    %v205 = vadd.f32 0.0, %v204
    %v206 = vpop.f32.mrf.mxu0
    %207 = vmatprep.mubr.f32.mxu0 0.0
    %208 = vmatmul.mubr.f32.gmra.mxu0 %v130
    %v209 = vpop.f32.mrf.mxu0
    %v210 = vadd.f32 0.0, %v209
    %v211 = vpop.f32.mrf.mxu0
    %212 = vmatprep.mubr.f32.mxu0 0.0
    %213 = vmatmul.mubr.f32.gmra.mxu0 %v133
    %v214 = vpop.f32.mrf.mxu0
    %v215 = vadd.f32 0.0, %v214
    %v216 = vpop.f32.mrf.mxu0
    %217 = vmatprep.mubr.f32.mxu0 0.0
    %218 = vmatmul.mubr.f32.gmra.mxu0 %v136
    %v219 = vpop.f32.mrf.mxu0
    %v220 = vadd.f32 0.0, %v219
    %v221 = vpop.f32.mrf.mxu0
    %222 = vdwg.mxu0
    %v223 = vadd.f32 %v37, %v205
    %v224 = vadd.f32 %v38, %v210
    %v225 = vadd.f32 %v39, %v215
    %v226 = vadd.f32 %v40, %v220
    %v227 = vmax.f32 %v223, -1.0
    %v228 = vmax.f32 %v224, -1.0
    %v229 = vmax.f32 %v225, -1.0
    %v230 = vmax.f32 %v226, -1.0
    %v231 = vmin.f32 %v227, 1.0
    %v232 = vmin.f32 %v228, 1.0
    %v233 = vmin.f32 %v229, 1.0
    %v234 = vmin.f32 %v230, 1.0
    %235 = vst.msk [vmem:[#allocation7] sm:$0xff] %vm116, %v231
    %236 = vst.msk [vmem:[#allocation7 + $0x8] sm:$0xff] %vm116, %v232
    %237 = vst.msk [vmem:[#allocation7 + $0x10] sm:$0xff] %vm116, %v233
    %238 = vst.msk [vmem:[#allocation7 + $0x18] sm:$0xff] %vm116, %v234
    // Predicated region
    $region22: #{tpu_custom_call.1} parent=1 // pred_check
      _
    $region23: #{tpu_custom_call.1} parent=1 // pred_check_branch
      %240 = sbr.rel (0) target = $region25
    $region24: #{tpu_custom_call.1} parent=1 // pred_region
      %s242 = ssub.s32 128, 128
      %243 = vsyncadd [#allocation5], %s242
      %s245 = sshll.u32 [#allocation6], 4
      %s246 = int_to_ptr.vmem [resolvable:$true] %s245
      %248 = dma.vmem_to_hbm [thread:$0]  %s246, 128, %s4, [#allocation5]
    $region25: #{tpu_custom_call.1} parent=1 // pred_fallthru
      _
    // Predicated region
    $region26: #{tpu_custom_call.1} parent=1 // pred_check
      _
    $region27: #{tpu_custom_call.1} parent=1 // pred_check_branch
      %250 = sbr.rel (0) target = $region29
    $region28: #{tpu_custom_call.1} parent=1 // pred_region
      %s252 = ssub.s32 512, 512
      %253 = vsyncadd [#allocation8], %s252
      %s254 = sshll.u32 [#allocation7], 4
      %s255 = int_to_ptr.vmem [resolvable:$true] %s254
      %260 = dma.vmem_to_hbm [thread:$0]  %s255, 512, %s5, [#allocation8], 128, 128, 8
    $region29: #{tpu_custom_call.1} parent=1 // pred_fallthru
      _
    // Predicated region
    $region30: #{tpu_custom_call.1} parent=1 // pred_check
      _
    $region31: #{tpu_custom_call.1} parent=1 // pred_check_branch
      %262 = sbr.rel (0) target = $region33
    $region32: #{tpu_custom_call.1} parent=1 // pred_region
      %263 = dma.done [#allocation5], 128
    $region33: #{tpu_custom_call.1} parent=1 // pred_fallthru
      _
    // Predicated region
    $region34: #{tpu_custom_call.1} parent=1 // pred_check
      _
    $region35: #{tpu_custom_call.1} parent=1 // pred_check_branch
      %265 = sbr.rel (0) target = $region37
    $region36: #{tpu_custom_call.1} parent=1 // pred_region
      %266 = dma.done [#allocation8], 512
    $region37: #{tpu_custom_call.1} parent=1 // pred_fallthru
      _
    %267 = vsyncpa [#allocation4], 1
    %268 = vsyncpa [#allocation5], 1
    %269 = vsyncpa [#allocation8], 1

</llo_original>
